<compile_context>
chip_gen: v6e
topology: v6e:2x2x1
jax: 0.10.0
libtpu: 0.0.40
codegen_flags: <defaults>
</compile_context>

<pallas_src>
import functools

import jax
import jax.numpy as jnp
from jax.experimental import pallas as pl
from jax.experimental.pallas import tpu as pltpu


def _pair(v):
    return (v, v) if isinstance(v, int) else tuple(v)


def _round_up(v, m):
    return -(-v // m) * m


def _patch_kernel(x_ref, o_ref, ck_ref, *, H, W, wh, ww, sh, sw, ph, pw, Ho, Wo, Hp):
    """One grid step processes Nb planes.

    x_ref : (Nb, H*W)      unpadded planes, flattened (lane-dense input).
    o_ref : (Nb, K*Ho*Wo)  lane-dense output; tap k occupies lanes
                           [k*Ho*Wo, (k+1)*Ho*Wo).
    ck_ref: (Nb, Hp*Wo)    scratch: zero-padded plane cropped to the columns of
                           one kw tap, row pitch Wo. With row-stride 1 every
                           (kh, kw) tap is ONE contiguous Ho*Wo lane segment.
    """
    dtype = o_ref.dtype
    Nb = o_ref.shape[0]
    HoWo = Ho * Wo

    def col_window(kw):
        # Output column j of tap (., kw) reads source column kw + j*sw - pw.
        j_lo = (-(-(pw - kw) // sw)) if pw > kw else 0
        j_lo = min(j_lo, Wo)
        j_hi = max(j_lo, min(Wo, (W - 1 - kw + pw) // sw + 1))
        return j_lo, j_hi

    if sh == 1:
        # Row-stride-1 path (sw may be > 1): one cropped plane per kw is shared
        # by all wh row taps; each tap read/store is one dense lane segment.
        if ph > 0:
            # Top/bottom pad rows are kw-independent and never overwritten ->
            # zero them exactly once per grid step.
            zpad = jnp.zeros((Nb, ph * Wo), dtype)
            ck_ref[:, pl.ds(0, ph * Wo)] = zpad
            ck_ref[:, pl.ds((H + ph) * Wo, ph * Wo)] = zpad

        for kw in range(ww):
            j_lo, j_hi = col_window(kw)
            width = j_hi - j_lo
            left, right = j_lo, Wo - j_hi
            src_col0 = kw + j_lo * sw - pw
            # Hoisted zero constants (JAX does not CSE broadcast_in_dim).
            zl = jnp.zeros((Nb, left), dtype) if left > 0 else None
            zr = jnp.zeros((Nb, right), dtype) if right > 0 else None

            def copy_row(h):
                # h is a Python int (unrolled) or a traced i32 (fori_loop);
                # all offsets are affine in h, widths are static.
                base = (h + ph) * Wo
                if left > 0:
                    ck_ref[:, pl.ds(base, left)] = zl
                if width > 0:
                    if sw == 1:
                        seg = x_ref[:, pl.ds(h * W + src_col0, width)]
                    else:
                        # TODO(synk): lane-strided read; sub-32-bit dtypes may
                        # lower to a slow gather path.
                        seg = x_ref[:, pl.ds(h * W + src_col0, width, stride=sw)]
                    ck_ref[:, pl.ds(base + left, width)] = seg
                if right > 0:
                    ck_ref[:, pl.ds(base + j_hi, right)] = zr

            if H <= 64:
                for h in range(H):            # small images: full unroll
                    copy_row(h)
            else:
                # Large images: rolled loop with partial unroll bounds code
                # size / compile time without losing dense copies.
                def body(h, carry):
                    copy_row(h)
                    return carry
                jax.lax.fori_loop(0, H, body, 0, unroll=8)

            # Each (kh, kw) tap is one contiguous Ho*Wo lane segment of the
            # crop: dense read + dense store, all Nb sublanes at once.
            for kh in range(wh):
                k = kh * ww + kw
                o_ref[:, pl.ds(k * HoWo, HoWo)] = ck_ref[:, pl.ds(kh * Wo, HoWo)]
    else:
        # Generic row-strided path (sh > 1): the crop row set depends on kh, so
        # it is rebuilt per (kh, kw); column-window constants are hoisted per
        # kw and zero fill is halo-only (no full-scratch re-zero).
        # TODO(synk): for sh > 1 the crop cannot be shared across kh taps
        # (different row subsets); a (Nb, Hp, Wo) scratch + sublane-strided tap
        # reads could avoid the rebuild at the cost of a relayout.
        z_row = jnp.zeros((Nb, Wo), dtype)
        for kw in range(ww):
            j_lo, j_hi = col_window(kw)
            width = j_hi - j_lo
            left, right = j_lo, Wo - j_hi
            src_col0 = kw + j_lo * sw - pw
            zl = jnp.zeros((Nb, left), dtype) if left > 0 else None
            zr = jnp.zeros((Nb, right), dtype) if right > 0 else None
            for kh in range(wh):
                k = kh * ww + kw
                for i in range(Ho):
                    h = kh + i * sh - ph          # source (unpadded) row
                    base = i * Wo
                    if h < 0 or h >= H or width <= 0:
                        ck_ref[:, pl.ds(base, Wo)] = z_row
                        continue
                    if left > 0:
                        ck_ref[:, pl.ds(base, left)] = zl
                    if sw == 1:
                        seg = x_ref[:, pl.ds(h * W + src_col0, width)]
                    else:
                        seg = x_ref[:, pl.ds(h * W + src_col0, width, stride=sw)]
                    ck_ref[:, pl.ds(base + left, width)] = seg
                    if right > 0:
                        ck_ref[:, pl.ds(base + j_hi, right)] = zr
                o_ref[:, pl.ds(k * HoWo, HoWo)] = ck_ref[:, pl.ds(0, HoWo)]


def _tpu_vmem_and_cores():
    """Best-effort per-TensorCore VMEM capacity and TensorCore count."""
    try:
        vmem = int(pltpu.get_tpu_info().vmem_capacity_bytes)
    except Exception:
        vmem = 64 * 1024 * 1024          # conservative default (v7x-sized)
    # 64-MiB-per-core chips (v7x) have 2 TensorCores; 128-MiB chips have 1.
    cores = 2 if vmem <= 64 * 1024 * 1024 else 1
    return vmem, cores


def extract_tensor_patches(x, window_size, stride=1, padding=0):
    """Pallas equivalent of ExtractTensorPatches.forward. Returns (C, K, B*Ho*Wo)."""
    wh, ww = _pair(window_size)
    sh, sw = _pair(stride)
    ph, pw = _pair(padding)

    B, C, H, W = x.shape
    K = wh * ww
    Hp, Wp = H + 2 * ph, W + 2 * pw
    Ho = (Hp - wh) // sh + 1
    Wo = (Wp - ww) // sw + 1
    P = B * C
    isz = jnp.dtype(x.dtype).itemsize
    pack = max(8, 32 // isz)   # sublane packing: 8 f32, 16 bf16, 32 int8/fp8

    # Planes flattened to lane-dense rows; padding is handled inside the kernel
    # (no jnp.pad HBM pass). The squeezed 2-D block keeps Nb on the sublane axis.
    x_flat = x.reshape(P, H * W)

    def vmem_bytes(nb):
        nbr = _round_up(nb, pack)
        in_b = 2 * nbr * _round_up(H * W, 128) * isz           # double-buffered input
        out_b = 2 * nbr * _round_up(K * Ho * Wo, 128) * isz    # double-buffered output
        ck_b = nbr * _round_up(Hp * Wo, 128) * isz             # crop scratch
        return in_b + out_b + ck_b

    # Generation-aware block-size policy.
    vmem_cap, cores = _tpu_vmem_and_cores()
    if vmem_cap <= 64 * 1024 * 1024:
        # v7x-class (64 MiB/core, 2 cores): keep >=4 steps per core when the
        # problem is big enough so input DMA / compute / writeback overlap.
        budget = int(0.60 * vmem_cap)
        limit_cap = 56 * 1024 * 1024
        min_steps = min(4 * cores, max(1, P // pack))
    else:
        # v5e / v6e (128 MiB, 1 core): no artificial step minimum, big blocks.
        budget = int(0.70 * vmem_cap)
        limit_cap = 100 * 1024 * 1024
        min_steps = 1
    budget = min(budget, limit_cap - 8 * 1024 * 1024)

    # Largest plane-block that (a) divides P, (b) fits the VMEM budget, with
    # preference for enough grid steps (pipelining / megacore sharding) and for
    # Nb being a multiple of the sublane packing (dense tiles for narrow dtypes).
    best = None
    for nb in range(1, P + 1):
        if P % nb:
            continue
        if vmem_bytes(nb) > budget:
            continue
        steps_ok = (P // nb) >= min_steps
        aligned = (nb % pack == 0) or (nb == P)
        key = (steps_ok, aligned, nb)
        if best is None or key > best[0]:
            best = (key, nb)
    # TODO(synk): if even nb=1 exceeds the budget (huge H*W*K) the kernel needs
    # an extra spatial grid axis; fall back to nb=1 and let the limit clamp.
    Nb = best[1] if best is not None else 1
    grid = (P // Nb,)

    # Right-sized VMEM request: real double-buffered footprint + headroom.
    vmem_limit = int(min(limit_cap,
                         max(32 * 1024 * 1024, vmem_bytes(Nb) + 8 * 1024 * 1024)))

    kernel = functools.partial(
        _patch_kernel,
        H=H, W=W, wh=wh, ww=ww, sh=sh, sw=sw, ph=ph, pw=pw, Ho=Ho, Wo=Wo, Hp=Hp,
    )

    # NOTE: if profiles still show exposed output-writeback DMA, add
    # pipeline_mode=pl.Buffered(3) to out_specs (budget permitting).
    out = pl.pallas_call(
        kernel,
        out_shape=jax.ShapeDtypeStruct((P, K * Ho * Wo), x.dtype),
        grid=grid,
        in_specs=[pl.BlockSpec((Nb, H * W), lambda n: (n, 0))],
        out_specs=pl.BlockSpec((Nb, K * Ho * Wo), lambda n: (n, 0)),
        scratch_shapes=[pltpu.VMEM((Nb, Hp * Wo), x.dtype)],
        compiler_params=pltpu.CompilerParams(
            dimension_semantics=("parallel",),
            vmem_limit_bytes=vmem_limit,
        ),
    )(x_flat)

    # (P, K*Ho*Wo) has the same row-major flat order as torch's output_tmp
    # (B, C*K, Ho, Wo); .reshape(C, K, B*Ho*Wo) therefore reproduces
    # output_tmp.view(C, K, -1) exactly (including the documented
    # batch-into-channel mixing quirk for B > 1). The reshape is free metadata.
    return out.reshape(C, K, B * Ho * Wo)


def _reference_forward(x, wh, ww, sh, sw, ph, pw):
    """Pure-JAX reference mirroring the PyTorch module literally:
    depthwise conv with the deterministic one-hot (identity) kernel."""
    B, C, H, W = x.shape
    K = wh * ww
    eye = jnp.eye(K, dtype=x.dtype).reshape(K, 1, wh, ww)
    kernel = jnp.tile(eye, (C, 1, 1, 1))
    out_tmp = jax.lax.conv_general_dilated(
        x,
        kernel,
        window_strides=(sh, sw),
        padding=((ph, ph), (pw, pw)),
        dimension_numbers=("NCHW", "OIHW", "NCHW"),
        feature_group_count=C,
    )  # (B, C*K, Ho, Wo)
    return out_tmp.reshape(C, K, -1)


if __name__ == "__main__":
    key = jax.random.PRNGKey(0)
    B, C, H, W = 2, 4, 16, 16
    x = jax.random.normal(key, (B, C, H, W), dtype=jnp.float32)

    # Config 1: 3x3 window, stride 1, padding 1 (padded fast path).
    out = extract_tensor_patches(x, (3, 3), 1, 1)
    out = jax.block_until_ready(out)
    ref = _reference_forward(x, 3, 3, 1, 1, 1, 1)
    Ho = (H + 2 * 1 - 3) // 1 + 1
    Wo = (W + 2 * 1 - 3) // 1 + 1
    assert out.shape == (C, 9, B * Ho * Wo), out.shape
    assert out.dtype == x.dtype
    assert jnp.allclose(out, ref, atol=1e-6), float(jnp.max(jnp.abs(out - ref)))

    # Config 2: asymmetric 2x3 window, stride 1, no padding (unpadded fast path).
    out2 = extract_tensor_patches(x, (2, 3), 1, 0)
    out2 = jax.block_until_ready(out2)
    ref2 = _reference_forward(x, 2, 3, 1, 1, 0, 0)
    assert out2.shape == ref2.shape, (out2.shape, ref2.shape)
    assert jnp.allclose(out2, ref2, atol=1e-6), float(jnp.max(jnp.abs(out2 - ref2)))

    print("KERNEL_OK")
</pallas_src>

<mosaic_0001>
module attributes {stable_mosaic.version = 11 : i64} {
  func.func @_patch_kernel(%arg0: i32, %arg1: memref<8x256xf32, #tpu.memory_space<vmem>>, %arg2: memref<8x2304xf32, #tpu.memory_space<vmem>>, %arg3: memref<8x288xf32, #tpu.memory_space<vmem>>) attributes {dimension_semantics = [#tpu.dimension_semantics<parallel>], iteration_bounds = array<i64: 1>, scalar_prefetch = 0 : i64, scratch_operands = 1 : i64, tpu.core_type = #tpu.core_type<tc>, window_params = [{transform_indices = @transform_0, window_bounds = array<i64: 8, 256>}, {transform_indices = @transform_1, window_bounds = array<i64: 8, 2304>}]} {
    %cst = arith.constant 0.000000e+00 : f32
    %0 = vector.broadcast %cst : f32 to vector<8x16xf32>
    %c0 = arith.constant 0 : index
    %c0_0 = arith.constant 0 : index
    %1 = vector.load %arg3[%c0, %c0_0] : memref<8x288xf32, #tpu.memory_space<vmem>>, vector<8x16xf32>
    tpu.vector_store %arg3[%c0, %c0_0], %0 {strides = array<i32>} : memref<8x288xf32, #tpu.memory_space<vmem>>, vector<8x16xf32>,
    %c0_1 = arith.constant 0 : index
    %c272 = arith.constant 272 : index
    %2 = vector.load %arg3[%c0_1, %c272] : memref<8x288xf32, #tpu.memory_space<vmem>>, vector<8x16xf32>
    tpu.vector_store %arg3[%c0_1, %c272], %0 {strides = array<i32>} : memref<8x288xf32, #tpu.memory_space<vmem>>, vector<8x16xf32>,
    %cst_2 = arith.constant 0.000000e+00 : f32
    %3 = vector.broadcast %cst_2 : f32 to vector<8x1xf32>
    %c0_3 = arith.constant 0 : index
    %c16 = arith.constant 16 : index
    %4 = vector.load %arg3[%c0_3, %c16] : memref<8x288xf32, #tpu.memory_space<vmem>>, vector<8x1xf32>
    tpu.vector_store %arg3[%c0_3, %c16], %3 {strides = array<i32>} : memref<8x288xf32, #tpu.memory_space<vmem>>, vector<8x1xf32>,
    %c0_4 = arith.constant 0 : index
    %c0_5 = arith.constant 0 : index
    %5 = vector.load %arg1[%c0_4, %c0_5] : memref<8x256xf32, #tpu.memory_space<vmem>>, vector<8x15xf32>
    %c0_6 = arith.constant 0 : index
    %c17 = arith.constant 17 : index
    %6 = vector.load %arg3[%c0_6, %c17] : memref<8x288xf32, #tpu.memory_space<vmem>>, vector<8x15xf32>
    tpu.vector_store %arg3[%c0_6, %c17], %5 {strides = array<i32>} : memref<8x288xf32, #tpu.memory_space<vmem>>, vector<8x15xf32>,
    %c0_7 = arith.constant 0 : index
    %c32 = arith.constant 32 : index
    %7 = vector.load %arg3[%c0_7, %c32] : memref<8x288xf32, #tpu.memory_space<vmem>>, vector<8x1xf32>
    tpu.vector_store %arg3[%c0_7, %c32], %3 {strides = array<i32>} : memref<8x288xf32, #tpu.memory_space<vmem>>, vector<8x1xf32>,
    %c0_8 = arith.constant 0 : index
    %c16_9 = arith.constant 16 : index
    %8 = vector.load %arg1[%c0_8, %c16_9] : memref<8x256xf32, #tpu.memory_space<vmem>>, vector<8x15xf32>
    %c0_10 = arith.constant 0 : index
    %c33 = arith.constant 33 : index
    %9 = vector.load %arg3[%c0_10, %c33] : memref<8x288xf32, #tpu.memory_space<vmem>>, vector<8x15xf32>
    tpu.vector_store %arg3[%c0_10, %c33], %8 {strides = array<i32>} : memref<8x288xf32, #tpu.memory_space<vmem>>, vector<8x15xf32>,
    %c0_11 = arith.constant 0 : index
    %c48 = arith.constant 48 : index
    %10 = vector.load %arg3[%c0_11, %c48] : memref<8x288xf32, #tpu.memory_space<vmem>>, vector<8x1xf32>
    tpu.vector_store %arg3[%c0_11, %c48], %3 {strides = array<i32>} : memref<8x288xf32, #tpu.memory_space<vmem>>, vector<8x1xf32>,
    %c0_12 = arith.constant 0 : index
    %c32_13 = arith.constant 32 : index
    %11 = vector.load %arg1[%c0_12, %c32_13] : memref<8x256xf32, #tpu.memory_space<vmem>>, vector<8x15xf32>
    %c0_14 = arith.constant 0 : index
    %c49 = arith.constant 49 : index
    %12 = vector.load %arg3[%c0_14, %c49] : memref<8x288xf32, #tpu.memory_space<vmem>>, vector<8x15xf32>
    tpu.vector_store %arg3[%c0_14, %c49], %11 {strides = array<i32>} : memref<8x288xf32, #tpu.memory_space<vmem>>, vector<8x15xf32>,
    %c0_15 = arith.constant 0 : index
    %c64 = arith.constant 64 : index
    %13 = vector.load %arg3[%c0_15, %c64] : memref<8x288xf32, #tpu.memory_space<vmem>>, vector<8x1xf32>
    tpu.vector_store %arg3[%c0_15, %c64], %3 {strides = array<i32>} : memref<8x288xf32, #tpu.memory_space<vmem>>, vector<8x1xf32>,
    %c0_16 = arith.constant 0 : index
    %c48_17 = arith.constant 48 : index
    %14 = vector.load %arg1[%c0_16, %c48_17] : memref<8x256xf32, #tpu.memory_space<vmem>>, vector<8x15xf32>
    %c0_18 = arith.constant 0 : index
    %c65 = arith.constant 65 : index
    %15 = vector.load %arg3[%c0_18, %c65] : memref<8x288xf32, #tpu.memory_space<vmem>>, vector<8x15xf32>
    tpu.vector_store %arg3[%c0_18, %c65], %14 {strides = array<i32>} : memref<8x288xf32, #tpu.memory_space<vmem>>, vector<8x15xf32>,
    %c0_19 = arith.constant 0 : index
    %c80 = arith.constant 80 : index
    %16 = vector.load %arg3[%c0_19, %c80] : memref<8x288xf32, #tpu.memory_space<vmem>>, vector<8x1xf32>
    tpu.vector_store %arg3[%c0_19, %c80], %3 {strides = array<i32>} : memref<8x288xf32, #tpu.memory_space<vmem>>, vector<8x1xf32>,
    %c0_20 = arith.constant 0 : index
    %c64_21 = arith.constant 64 : index
    %17 = vector.load %arg1[%c0_20, %c64_21] : memref<8x256xf32, #tpu.memory_space<vmem>>, vector<8x15xf32>
    %c0_22 = arith.constant 0 : index
    %c81 = arith.constant 81 : index
    %18 = vector.load %arg3[%c0_22, %c81] : memref<8x288xf32, #tpu.memory_space<vmem>>, vector<8x15xf32>
    tpu.vector_store %arg3[%c0_22, %c81], %17 {strides = array<i32>} : memref<8x288xf32, #tpu.memory_space<vmem>>, vector<8x15xf32>,
    %c0_23 = arith.constant 0 : index
    %c96 = arith.constant 96 : index
    %19 = vector.load %arg3[%c0_23, %c96] : memref<8x288xf32, #tpu.memory_space<vmem>>, vector<8x1xf32>
    tpu.vector_store %arg3[%c0_23, %c96], %3 {strides = array<i32>} : memref<8x288xf32, #tpu.memory_space<vmem>>, vector<8x1xf32>,
    %c0_24 = arith.constant 0 : index
    %c80_25 = arith.constant 80 : index
    %20 = vector.load %arg1[%c0_24, %c80_25] : memref<8x256xf32, #tpu.memory_space<vmem>>, vector<8x15xf32>
    %c0_26 = arith.constant 0 : index
    %c97 = arith.constant 97 : index
    %21 = vector.load %arg3[%c0_26, %c97] : memref<8x288xf32, #tpu.memory_space<vmem>>, vector<8x15xf32>
    tpu.vector_store %arg3[%c0_26, %c97], %20 {strides = array<i32>} : memref<8x288xf32, #tpu.memory_space<vmem>>, vector<8x15xf32>,
    %c0_27 = arith.constant 0 : index
    %c112 = arith.constant 112 : index
    %22 = vector.load %arg3[%c0_27, %c112] : memref<8x288xf32, #tpu.memory_space<vmem>>, vector<8x1xf32>
    tpu.vector_store %arg3[%c0_27, %c112], %3 {strides = array<i32>} : memref<8x288xf32, #tpu.memory_space<vmem>>, vector<8x1xf32>,
    %c0_28 = arith.constant 0 : index
    %c96_29 = arith.constant 96 : index
    %23 = vector.load %arg1[%c0_28, %c96_29] : memref<8x256xf32, #tpu.memory_space<vmem>>, vector<8x15xf32>
    %c0_30 = arith.constant 0 : index
    %c113 = arith.constant 113 : index
    %24 = vector.load %arg3[%c0_30, %c113] : memref<8x288xf32, #tpu.memory_space<vmem>>, vector<8x15xf32>
    tpu.vector_store %arg3[%c0_30, %c113], %23 {strides = array<i32>} : memref<8x288xf32, #tpu.memory_space<vmem>>, vector<8x15xf32>,
    %c0_31 = arith.constant 0 : index
    %c128 = arith.constant 128 : index
    %25 = vector.load %arg3[%c0_31, %c128] : memref<8x288xf32, #tpu.memory_space<vmem>>, vector<8x1xf32>
    tpu.vector_store %arg3[%c0_31, %c128], %3 {strides = array<i32>} : memref<8x288xf32, #tpu.memory_space<vmem>>, vector<8x1xf32>,
    %c0_32 = arith.constant 0 : index
    %c112_33 = arith.constant 112 : index
    %26 = vector.load %arg1[%c0_32, %c112_33] : memref<8x256xf32, #tpu.memory_space<vmem>>, vector<8x15xf32>
    %c0_34 = arith.constant 0 : index
    %c129 = arith.constant 129 : index
    %27 = vector.load %arg3[%c0_34, %c129] : memref<8x288xf32, #tpu.memory_space<vmem>>, vector<8x15xf32>
    tpu.vector_store %arg3[%c0_34, %c129], %26 {strides = array<i32>} : memref<8x288xf32, #tpu.memory_space<vmem>>, vector<8x15xf32>,
    %c0_35 = arith.constant 0 : index
    %c144 = arith.constant 144 : index
    %28 = vector.load %arg3[%c0_35, %c144] : memref<8x288xf32, #tpu.memory_space<vmem>>, vector<8x1xf32>
    tpu.vector_store %arg3[%c0_35, %c144], %3 {strides = array<i32>} : memref<8x288xf32, #tpu.memory_space<vmem>>, vector<8x1xf32>,
    %c0_36 = arith.constant 0 : index
    %c128_37 = arith.constant 128 : index
    %29 = vector.load %arg1[%c0_36, %c128_37] : memref<8x256xf32, #tpu.memory_space<vmem>>, vector<8x15xf32>
    %c0_38 = arith.constant 0 : index
    %c145 = arith.constant 145 : index
    %30 = vector.load %arg3[%c0_38, %c145] : memref<8x288xf32, #tpu.memory_space<vmem>>, vector<8x15xf32>
    tpu.vector_store %arg3[%c0_38, %c145], %29 {strides = array<i32>} : memref<8x288xf32, #tpu.memory_space<vmem>>, vector<8x15xf32>,
    %c0_39 = arith.constant 0 : index
    %c160 = arith.constant 160 : index
    %31 = vector.load %arg3[%c0_39, %c160] : memref<8x288xf32, #tpu.memory_space<vmem>>, vector<8x1xf32>
    tpu.vector_store %arg3[%c0_39, %c160], %3 {strides = array<i32>} : memref<8x288xf32, #tpu.memory_space<vmem>>, vector<8x1xf32>,
    %c0_40 = arith.constant 0 : index
    %c144_41 = arith.constant 144 : index
    %32 = vector.load %arg1[%c0_40, %c144_41] : memref<8x256xf32, #tpu.memory_space<vmem>>, vector<8x15xf32>
    %c0_42 = arith.constant 0 : index
    %c161 = arith.constant 161 : index
    %33 = vector.load %arg3[%c0_42, %c161] : memref<8x288xf32, #tpu.memory_space<vmem>>, vector<8x15xf32>
    tpu.vector_store %arg3[%c0_42, %c161], %32 {strides = array<i32>} : memref<8x288xf32, #tpu.memory_space<vmem>>, vector<8x15xf32>,
    %c0_43 = arith.constant 0 : index
    %c176 = arith.constant 176 : index
    %34 = vector.load %arg3[%c0_43, %c176] : memref<8x288xf32, #tpu.memory_space<vmem>>, vector<8x1xf32>
    tpu.vector_store %arg3[%c0_43, %c176], %3 {strides = array<i32>} : memref<8x288xf32, #tpu.memory_space<vmem>>, vector<8x1xf32>,
    %c0_44 = arith.constant 0 : index
    %c160_45 = arith.constant 160 : index
    %35 = vector.load %arg1[%c0_44, %c160_45] : memref<8x256xf32, #tpu.memory_space<vmem>>, vector<8x15xf32>
    %c0_46 = arith.constant 0 : index
    %c177 = arith.constant 177 : index
    %36 = vector.load %arg3[%c0_46, %c177] : memref<8x288xf32, #tpu.memory_space<vmem>>, vector<8x15xf32>
    tpu.vector_store %arg3[%c0_46, %c177], %35 {strides = array<i32>} : memref<8x288xf32, #tpu.memory_space<vmem>>, vector<8x15xf32>,
    %c0_47 = arith.constant 0 : index
    %c192 = arith.constant 192 : index
    %37 = vector.load %arg3[%c0_47, %c192] : memref<8x288xf32, #tpu.memory_space<vmem>>, vector<8x1xf32>
    tpu.vector_store %arg3[%c0_47, %c192], %3 {strides = array<i32>} : memref<8x288xf32, #tpu.memory_space<vmem>>, vector<8x1xf32>,
    %c0_48 = arith.constant 0 : index
    %c176_49 = arith.constant 176 : index
    %38 = vector.load %arg1[%c0_48, %c176_49] : memref<8x256xf32, #tpu.memory_space<vmem>>, vector<8x15xf32>
    %c0_50 = arith.constant 0 : index
    %c193 = arith.constant 193 : index
    %39 = vector.load %arg3[%c0_50, %c193] : memref<8x288xf32, #tpu.memory_space<vmem>>, vector<8x15xf32>
    tpu.vector_store %arg3[%c0_50, %c193], %38 {strides = array<i32>} : memref<8x288xf32, #tpu.memory_space<vmem>>, vector<8x15xf32>,
    %c0_51 = arith.constant 0 : index
    %c208 = arith.constant 208 : index
    %40 = vector.load %arg3[%c0_51, %c208] : memref<8x288xf32, #tpu.memory_space<vmem>>, vector<8x1xf32>
    tpu.vector_store %arg3[%c0_51, %c208], %3 {strides = array<i32>} : memref<8x288xf32, #tpu.memory_space<vmem>>, vector<8x1xf32>,
    %c0_52 = arith.constant 0 : index
    %c192_53 = arith.constant 192 : index
    %41 = vector.load %arg1[%c0_52, %c192_53] : memref<8x256xf32, #tpu.memory_space<vmem>>, vector<8x15xf32>
    %c0_54 = arith.constant 0 : index
    %c209 = arith.constant 209 : index
    %42 = vector.load %arg3[%c0_54, %c209] : memref<8x288xf32, #tpu.memory_space<vmem>>, vector<8x15xf32>
    tpu.vector_store %arg3[%c0_54, %c209], %41 {strides = array<i32>} : memref<8x288xf32, #tpu.memory_space<vmem>>, vector<8x15xf32>,
    %c0_55 = arith.constant 0 : index
    %c224 = arith.constant 224 : index
    %43 = vector.load %arg3[%c0_55, %c224] : memref<8x288xf32, #tpu.memory_space<vmem>>, vector<8x1xf32>
    tpu.vector_store %arg3[%c0_55, %c224], %3 {strides = array<i32>} : memref<8x288xf32, #tpu.memory_space<vmem>>, vector<8x1xf32>,
    %c0_56 = arith.constant 0 : index
    %c208_57 = arith.constant 208 : index
    %44 = vector.load %arg1[%c0_56, %c208_57] : memref<8x256xf32, #tpu.memory_space<vmem>>, vector<8x15xf32>
    %c0_58 = arith.constant 0 : index
    %c225 = arith.constant 225 : index
    %45 = vector.load %arg3[%c0_58, %c225] : memref<8x288xf32, #tpu.memory_space<vmem>>, vector<8x15xf32>
    tpu.vector_store %arg3[%c0_58, %c225], %44 {strides = array<i32>} : memref<8x288xf32, #tpu.memory_space<vmem>>, vector<8x15xf32>,
    %c0_59 = arith.constant 0 : index
    %c240 = arith.constant 240 : index
    %46 = vector.load %arg3[%c0_59, %c240] : memref<8x288xf32, #tpu.memory_space<vmem>>, vector<8x1xf32>
    tpu.vector_store %arg3[%c0_59, %c240], %3 {strides = array<i32>} : memref<8x288xf32, #tpu.memory_space<vmem>>, vector<8x1xf32>,
    %c0_60 = arith.constant 0 : index
    %c224_61 = arith.constant 224 : index
    %47 = vector.load %arg1[%c0_60, %c224_61] : memref<8x256xf32, #tpu.memory_space<vmem>>, vector<8x15xf32>
    %c0_62 = arith.constant 0 : index
    %c241 = arith.constant 241 : index
    %48 = vector.load %arg3[%c0_62, %c241] : memref<8x288xf32, #tpu.memory_space<vmem>>, vector<8x15xf32>
    tpu.vector_store %arg3[%c0_62, %c241], %47 {strides = array<i32>} : memref<8x288xf32, #tpu.memory_space<vmem>>, vector<8x15xf32>,
    %c0_63 = arith.constant 0 : index
    %c256 = arith.constant 256 : index
    %49 = vector.load %arg3[%c0_63, %c256] : memref<8x288xf32, #tpu.memory_space<vmem>>, vector<8x1xf32>
    tpu.vector_store %arg3[%c0_63, %c256], %3 {strides = array<i32>} : memref<8x288xf32, #tpu.memory_space<vmem>>, vector<8x1xf32>,
    %c0_64 = arith.constant 0 : index
    %c240_65 = arith.constant 240 : index
    %50 = vector.load %arg1[%c0_64, %c240_65] : memref<8x256xf32, #tpu.memory_space<vmem>>, vector<8x15xf32>
    %c0_66 = arith.constant 0 : index
    %c257 = arith.constant 257 : index
    %51 = vector.load %arg3[%c0_66, %c257] : memref<8x288xf32, #tpu.memory_space<vmem>>, vector<8x15xf32>
    tpu.vector_store %arg3[%c0_66, %c257], %50 {strides = array<i32>} : memref<8x288xf32, #tpu.memory_space<vmem>>, vector<8x15xf32>,
    %c0_67 = arith.constant 0 : index
    %c0_68 = arith.constant 0 : index
    %52 = vector.load %arg3[%c0_67, %c0_68] : memref<8x288xf32, #tpu.memory_space<vmem>>, vector<8x256xf32>
    %c0_69 = arith.constant 0 : index
    %c0_70 = arith.constant 0 : index
    %53 = vector.load %arg2[%c0_69, %c0_70] : memref<8x2304xf32, #tpu.memory_space<vmem>>, vector<8x256xf32>
    tpu.vector_store %arg2[%c0_69, %c0_70], %52 {strides = array<i32>} : memref<8x2304xf32, #tpu.memory_space<vmem>>, vector<8x256xf32>,
    %c0_71 = arith.constant 0 : index
    %c16_72 = arith.constant 16 : index
    %54 = vector.load %arg3[%c0_71, %c16_72] : memref<8x288xf32, #tpu.memory_space<vmem>>, vector<8x256xf32>
    %c0_73 = arith.constant 0 : index
    %c768 = arith.constant 768 : index
    %55 = vector.load %arg2[%c0_73, %c768] : memref<8x2304xf32, #tpu.memory_space<vmem>>, vector<8x256xf32>
    tpu.vector_store %arg2[%c0_73, %c768], %54 {strides = array<i32>} : memref<8x2304xf32, #tpu.memory_space<vmem>>, vector<8x256xf32>,
    %c0_74 = arith.constant 0 : index
    %c32_75 = arith.constant 32 : index
    %56 = vector.load %arg3[%c0_74, %c32_75] : memref<8x288xf32, #tpu.memory_space<vmem>>, vector<8x256xf32>
    %c0_76 = arith.constant 0 : index
    %c1536 = arith.constant 1536 : index
    %57 = vector.load %arg2[%c0_76, %c1536] : memref<8x2304xf32, #tpu.memory_space<vmem>>, vector<8x256xf32>
    tpu.vector_store %arg2[%c0_76, %c1536], %56 {strides = array<i32>} : memref<8x2304xf32, #tpu.memory_space<vmem>>, vector<8x256xf32>,
    %c0_77 = arith.constant 0 : index
    %c0_78 = arith.constant 0 : index
    %58 = vector.load %arg1[%c0_77, %c0_78] : memref<8x256xf32, #tpu.memory_space<vmem>>, vector<8x16xf32>
    %c0_79 = arith.constant 0 : index
    %c16_80 = arith.constant 16 : index
    %59 = vector.load %arg3[%c0_79, %c16_80] : memref<8x288xf32, #tpu.memory_space<vmem>>, vector<8x16xf32>
    tpu.vector_store %arg3[%c0_79, %c16_80], %58 {strides = array<i32>} : memref<8x288xf32, #tpu.memory_space<vmem>>, vector<8x16xf32>,
    %c0_81 = arith.constant 0 : index
    %c16_82 = arith.constant 16 : index
    %60 = vector.load %arg1[%c0_81, %c16_82] : memref<8x256xf32, #tpu.memory_space<vmem>>, vector<8x16xf32>
    %c0_83 = arith.constant 0 : index
    %c32_84 = arith.constant 32 : index
    %61 = vector.load %arg3[%c0_83, %c32_84] : memref<8x288xf32, #tpu.memory_space<vmem>>, vector<8x16xf32>
    tpu.vector_store %arg3[%c0_83, %c32_84], %60 {strides = array<i32>} : memref<8x288xf32, #tpu.memory_space<vmem>>, vector<8x16xf32>,
    %c0_85 = arith.constant 0 : index
    %c32_86 = arith.constant 32 : index
    %62 = vector.load %arg1[%c0_85, %c32_86] : memref<8x256xf32, #tpu.memory_space<vmem>>, vector<8x16xf32>
    %c0_87 = arith.constant 0 : index
    %c48_88 = arith.constant 48 : index
    %63 = vector.load %arg3[%c0_87, %c48_88] : memref<8x288xf32, #tpu.memory_space<vmem>>, vector<8x16xf32>
    tpu.vector_store %arg3[%c0_87, %c48_88], %62 {strides = array<i32>} : memref<8x288xf32, #tpu.memory_space<vmem>>, vector<8x16xf32>,
    %c0_89 = arith.constant 0 : index
    %c48_90 = arith.constant 48 : index
    %64 = vector.load %arg1[%c0_89, %c48_90] : memref<8x256xf32, #tpu.memory_space<vmem>>, vector<8x16xf32>
    %c0_91 = arith.constant 0 : index
    %c64_92 = arith.constant 64 : index
    %65 = vector.load %arg3[%c0_91, %c64_92] : memref<8x288xf32, #tpu.memory_space<vmem>>, vector<8x16xf32>
    tpu.vector_store %arg3[%c0_91, %c64_92], %64 {strides = array<i32>} : memref<8x288xf32, #tpu.memory_space<vmem>>, vector<8x16xf32>,
    %c0_93 = arith.constant 0 : index
    %c64_94 = arith.constant 64 : index
    %66 = vector.load %arg1[%c0_93, %c64_94] : memref<8x256xf32, #tpu.memory_space<vmem>>, vector<8x16xf32>
    %c0_95 = arith.constant 0 : index
    %c80_96 = arith.constant 80 : index
    %67 = vector.load %arg3[%c0_95, %c80_96] : memref<8x288xf32, #tpu.memory_space<vmem>>, vector<8x16xf32>
    tpu.vector_store %arg3[%c0_95, %c80_96], %66 {strides = array<i32>} : memref<8x288xf32, #tpu.memory_space<vmem>>, vector<8x16xf32>,
    %c0_97 = arith.constant 0 : index
    %c80_98 = arith.constant 80 : index
    %68 = vector.load %arg1[%c0_97, %c80_98] : memref<8x256xf32, #tpu.memory_space<vmem>>, vector<8x16xf32>
    %c0_99 = arith.constant 0 : index
    %c96_100 = arith.constant 96 : index
    %69 = vector.load %arg3[%c0_99, %c96_100] : memref<8x288xf32, #tpu.memory_space<vmem>>, vector<8x16xf32>
    tpu.vector_store %arg3[%c0_99, %c96_100], %68 {strides = array<i32>} : memref<8x288xf32, #tpu.memory_space<vmem>>, vector<8x16xf32>,
    %c0_101 = arith.constant 0 : index
    %c96_102 = arith.constant 96 : index
    %70 = vector.load %arg1[%c0_101, %c96_102] : memref<8x256xf32, #tpu.memory_space<vmem>>, vector<8x16xf32>
    %c0_103 = arith.constant 0 : index
    %c112_104 = arith.constant 112 : index
    %71 = vector.load %arg3[%c0_103, %c112_104] : memref<8x288xf32, #tpu.memory_space<vmem>>, vector<8x16xf32>
    tpu.vector_store %arg3[%c0_103, %c112_104], %70 {strides = array<i32>} : memref<8x288xf32, #tpu.memory_space<vmem>>, vector<8x16xf32>,
    %c0_105 = arith.constant 0 : index
    %c112_106 = arith.constant 112 : index
    %72 = vector.load %arg1[%c0_105, %c112_106] : memref<8x256xf32, #tpu.memory_space<vmem>>, vector<8x16xf32>
    %c0_107 = arith.constant 0 : index
    %c128_108 = arith.constant 128 : index
    %73 = vector.load %arg3[%c0_107, %c128_108] : memref<8x288xf32, #tpu.memory_space<vmem>>, vector<8x16xf32>
    tpu.vector_store %arg3[%c0_107, %c128_108], %72 {strides = array<i32>} : memref<8x288xf32, #tpu.memory_space<vmem>>, vector<8x16xf32>,
    %c0_109 = arith.constant 0 : index
    %c128_110 = arith.constant 128 : index
    %74 = vector.load %arg1[%c0_109, %c128_110] : memref<8x256xf32, #tpu.memory_space<vmem>>, vector<8x16xf32>
    %c0_111 = arith.constant 0 : index
    %c144_112 = arith.constant 144 : index
    %75 = vector.load %arg3[%c0_111, %c144_112] : memref<8x288xf32, #tpu.memory_space<vmem>>, vector<8x16xf32>
    tpu.vector_store %arg3[%c0_111, %c144_112], %74 {strides = array<i32>} : memref<8x288xf32, #tpu.memory_space<vmem>>, vector<8x16xf32>,
    %c0_113 = arith.constant 0 : index
    %c144_114 = arith.constant 144 : index
    %76 = vector.load %arg1[%c0_113, %c144_114] : memref<8x256xf32, #tpu.memory_space<vmem>>, vector<8x16xf32>
    %c0_115 = arith.constant 0 : index
    %c160_116 = arith.constant 160 : index
    %77 = vector.load %arg3[%c0_115, %c160_116] : memref<8x288xf32, #tpu.memory_space<vmem>>, vector<8x16xf32>
    tpu.vector_store %arg3[%c0_115, %c160_116], %76 {strides = array<i32>} : memref<8x288xf32, #tpu.memory_space<vmem>>, vector<8x16xf32>,
    %c0_117 = arith.constant 0 : index
    %c160_118 = arith.constant 160 : index
    %78 = vector.load %arg1[%c0_117, %c160_118] : memref<8x256xf32, #tpu.memory_space<vmem>>, vector<8x16xf32>
    %c0_119 = arith.constant 0 : index
    %c176_120 = arith.constant 176 : index
    %79 = vector.load %arg3[%c0_119, %c176_120] : memref<8x288xf32, #tpu.memory_space<vmem>>, vector<8x16xf32>
    tpu.vector_store %arg3[%c0_119, %c176_120], %78 {strides = array<i32>} : memref<8x288xf32, #tpu.memory_space<vmem>>, vector<8x16xf32>,
    %c0_121 = arith.constant 0 : index
    %c176_122 = arith.constant 176 : index
    %80 = vector.load %arg1[%c0_121, %c176_122] : memref<8x256xf32, #tpu.memory_space<vmem>>, vector<8x16xf32>
    %c0_123 = arith.constant 0 : index
    %c192_124 = arith.constant 192 : index
    %81 = vector.load %arg3[%c0_123, %c192_124] : memref<8x288xf32, #tpu.memory_space<vmem>>, vector<8x16xf32>
    tpu.vector_store %arg3[%c0_123, %c192_124], %80 {strides = array<i32>} : memref<8x288xf32, #tpu.memory_space<vmem>>, vector<8x16xf32>,
    %c0_125 = arith.constant 0 : index
    %c192_126 = arith.constant 192 : index
    %82 = vector.load %arg1[%c0_125, %c192_126] : memref<8x256xf32, #tpu.memory_space<vmem>>, vector<8x16xf32>
    %c0_127 = arith.constant 0 : index
    %c208_128 = arith.constant 208 : index
    %83 = vector.load %arg3[%c0_127, %c208_128] : memref<8x288xf32, #tpu.memory_space<vmem>>, vector<8x16xf32>
    tpu.vector_store %arg3[%c0_127, %c208_128], %82 {strides = array<i32>} : memref<8x288xf32, #tpu.memory_space<vmem>>, vector<8x16xf32>,
    %c0_129 = arith.constant 0 : index
    %c208_130 = arith.constant 208 : index
    %84 = vector.load %arg1[%c0_129, %c208_130] : memref<8x256xf32, #tpu.memory_space<vmem>>, vector<8x16xf32>
    %c0_131 = arith.constant 0 : index
    %c224_132 = arith.constant 224 : index
    %85 = vector.load %arg3[%c0_131, %c224_132] : memref<8x288xf32, #tpu.memory_space<vmem>>, vector<8x16xf32>
    tpu.vector_store %arg3[%c0_131, %c224_132], %84 {strides = array<i32>} : memref<8x288xf32, #tpu.memory_space<vmem>>, vector<8x16xf32>,
    %c0_133 = arith.constant 0 : index
    %c224_134 = arith.constant 224 : index
    %86 = vector.load %arg1[%c0_133, %c224_134] : memref<8x256xf32, #tpu.memory_space<vmem>>, vector<8x16xf32>
    %c0_135 = arith.constant 0 : index
    %c240_136 = arith.constant 240 : index
    %87 = vector.load %arg3[%c0_135, %c240_136] : memref<8x288xf32, #tpu.memory_space<vmem>>, vector<8x16xf32>
    tpu.vector_store %arg3[%c0_135, %c240_136], %86 {strides = array<i32>} : memref<8x288xf32, #tpu.memory_space<vmem>>, vector<8x16xf32>,
    %c0_137 = arith.constant 0 : index
    %c240_138 = arith.constant 240 : index
    %88 = vector.load %arg1[%c0_137, %c240_138] : memref<8x256xf32, #tpu.memory_space<vmem>>, vector<8x16xf32>
    %c0_139 = arith.constant 0 : index
    %c256_140 = arith.constant 256 : index
    %89 = vector.load %arg3[%c0_139, %c256_140] : memref<8x288xf32, #tpu.memory_space<vmem>>, vector<8x16xf32>
    tpu.vector_store %arg3[%c0_139, %c256_140], %88 {strides = array<i32>} : memref<8x288xf32, #tpu.memory_space<vmem>>, vector<8x16xf32>,
    %c0_141 = arith.constant 0 : index
    %c0_142 = arith.constant 0 : index
    %90 = vector.load %arg3[%c0_141, %c0_142] : memref<8x288xf32, #tpu.memory_space<vmem>>, vector<8x256xf32>
    %c0_143 = arith.constant 0 : index
    %c256_144 = arith.constant 256 : index
    %91 = vector.load %arg2[%c0_143, %c256_144] : memref<8x2304xf32, #tpu.memory_space<vmem>>, vector<8x256xf32>
    tpu.vector_store %arg2[%c0_143, %c256_144], %90 {strides = array<i32>} : memref<8x2304xf32, #tpu.memory_space<vmem>>, vector<8x256xf32>,
    %c0_145 = arith.constant 0 : index
    %c16_146 = arith.constant 16 : index
    %92 = vector.load %arg3[%c0_145, %c16_146] : memref<8x288xf32, #tpu.memory_space<vmem>>, vector<8x256xf32>
    %c0_147 = arith.constant 0 : index
    %c1024 = arith.constant 1024 : index
    %93 = vector.load %arg2[%c0_147, %c1024] : memref<8x2304xf32, #tpu.memory_space<vmem>>, vector<8x256xf32>
    tpu.vector_store %arg2[%c0_147, %c1024], %92 {strides = array<i32>} : memref<8x2304xf32, #tpu.memory_space<vmem>>, vector<8x256xf32>,
    %c0_148 = arith.constant 0 : index
    %c32_149 = arith.constant 32 : index
    %94 = vector.load %arg3[%c0_148, %c32_149] : memref<8x288xf32, #tpu.memory_space<vmem>>, vector<8x256xf32>
    %c0_150 = arith.constant 0 : index
    %c1792 = arith.constant 1792 : index
    %95 = vector.load %arg2[%c0_150, %c1792] : memref<8x2304xf32, #tpu.memory_space<vmem>>, vector<8x256xf32>
    tpu.vector_store %arg2[%c0_150, %c1792], %94 {strides = array<i32>} : memref<8x2304xf32, #tpu.memory_space<vmem>>, vector<8x256xf32>,
    %cst_151 = arith.constant 0.000000e+00 : f32
    %96 = vector.broadcast %cst_151 : f32 to vector<8x1xf32>
    %c0_152 = arith.constant 0 : index
    %c1 = arith.constant 1 : index
    %97 = vector.load %arg1[%c0_152, %c1] : memref<8x256xf32, #tpu.memory_space<vmem>>, vector<8x15xf32>
    %c0_153 = arith.constant 0 : index
    %c16_154 = arith.constant 16 : index
    %98 = vector.load %arg3[%c0_153, %c16_154] : memref<8x288xf32, #tpu.memory_space<vmem>>, vector<8x15xf32>
    tpu.vector_store %arg3[%c0_153, %c16_154], %97 {strides = array<i32>} : memref<8x288xf32, #tpu.memory_space<vmem>>, vector<8x15xf32>,
    %c0_155 = arith.constant 0 : index
    %c31 = arith.constant 31 : index
    %99 = vector.load %arg3[%c0_155, %c31] : memref<8x288xf32, #tpu.memory_space<vmem>>, vector<8x1xf32>
    tpu.vector_store %arg3[%c0_155, %c31], %96 {strides = array<i32>} : memref<8x288xf32, #tpu.memory_space<vmem>>, vector<8x1xf32>,
    %c0_156 = arith.constant 0 : index
    %c17_157 = arith.constant 17 : index
    %100 = vector.load %arg1[%c0_156, %c17_157] : memref<8x256xf32, #tpu.memory_space<vmem>>, vector<8x15xf32>
    %c0_158 = arith.constant 0 : index
    %c32_159 = arith.constant 32 : index
    %101 = vector.load %arg3[%c0_158, %c32_159] : memref<8x288xf32, #tpu.memory_space<vmem>>, vector<8x15xf32>
    tpu.vector_store %arg3[%c0_158, %c32_159], %100 {strides = array<i32>} : memref<8x288xf32, #tpu.memory_space<vmem>>, vector<8x15xf32>,
    %c0_160 = arith.constant 0 : index
    %c47 = arith.constant 47 : index
    %102 = vector.load %arg3[%c0_160, %c47] : memref<8x288xf32, #tpu.memory_space<vmem>>, vector<8x1xf32>
    tpu.vector_store %arg3[%c0_160, %c47], %96 {strides = array<i32>} : memref<8x288xf32, #tpu.memory_space<vmem>>, vector<8x1xf32>,
    %c0_161 = arith.constant 0 : index
    %c33_162 = arith.constant 33 : index
    %103 = vector.load %arg1[%c0_161, %c33_162] : memref<8x256xf32, #tpu.memory_space<vmem>>, vector<8x15xf32>
    %c0_163 = arith.constant 0 : index
    %c48_164 = arith.constant 48 : index
    %104 = vector.load %arg3[%c0_163, %c48_164] : memref<8x288xf32, #tpu.memory_space<vmem>>, vector<8x15xf32>
    tpu.vector_store %arg3[%c0_163, %c48_164], %103 {strides = array<i32>} : memref<8x288xf32, #tpu.memory_space<vmem>>, vector<8x15xf32>,
    %c0_165 = arith.constant 0 : index
    %c63 = arith.constant 63 : index
    %105 = vector.load %arg3[%c0_165, %c63] : memref<8x288xf32, #tpu.memory_space<vmem>>, vector<8x1xf32>
    tpu.vector_store %arg3[%c0_165, %c63], %96 {strides = array<i32>} : memref<8x288xf32, #tpu.memory_space<vmem>>, vector<8x1xf32>,
    %c0_166 = arith.constant 0 : index
    %c49_167 = arith.constant 49 : index
    %106 = vector.load %arg1[%c0_166, %c49_167] : memref<8x256xf32, #tpu.memory_space<vmem>>, vector<8x15xf32>
    %c0_168 = arith.constant 0 : index
    %c64_169 = arith.constant 64 : index
    %107 = vector.load %arg3[%c0_168, %c64_169] : memref<8x288xf32, #tpu.memory_space<vmem>>, vector<8x15xf32>
    tpu.vector_store %arg3[%c0_168, %c64_169], %106 {strides = array<i32>} : memref<8x288xf32, #tpu.memory_space<vmem>>, vector<8x15xf32>,
    %c0_170 = arith.constant 0 : index
    %c79 = arith.constant 79 : index
    %108 = vector.load %arg3[%c0_170, %c79] : memref<8x288xf32, #tpu.memory_space<vmem>>, vector<8x1xf32>
    tpu.vector_store %arg3[%c0_170, %c79], %96 {strides = array<i32>} : memref<8x288xf32, #tpu.memory_space<vmem>>, vector<8x1xf32>,
    %c0_171 = arith.constant 0 : index
    %c65_172 = arith.constant 65 : index
    %109 = vector.load %arg1[%c0_171, %c65_172] : memref<8x256xf32, #tpu.memory_space<vmem>>, vector<8x15xf32>
    %c0_173 = arith.constant 0 : index
    %c80_174 = arith.constant 80 : index
    %110 = vector.load %arg3[%c0_173, %c80_174] : memref<8x288xf32, #tpu.memory_space<vmem>>, vector<8x15xf32>
    tpu.vector_store %arg3[%c0_173, %c80_174], %109 {strides = array<i32>} : memref<8x288xf32, #tpu.memory_space<vmem>>, vector<8x15xf32>,
    %c0_175 = arith.constant 0 : index
    %c95 = arith.constant 95 : index
    %111 = vector.load %arg3[%c0_175, %c95] : memref<8x288xf32, #tpu.memory_space<vmem>>, vector<8x1xf32>
    tpu.vector_store %arg3[%c0_175, %c95], %96 {strides = array<i32>} : memref<8x288xf32, #tpu.memory_space<vmem>>, vector<8x1xf32>,
    %c0_176 = arith.constant 0 : index
    %c81_177 = arith.constant 81 : index
    %112 = vector.load %arg1[%c0_176, %c81_177] : memref<8x256xf32, #tpu.memory_space<vmem>>, vector<8x15xf32>
    %c0_178 = arith.constant 0 : index
    %c96_179 = arith.constant 96 : index
    %113 = vector.load %arg3[%c0_178, %c96_179] : memref<8x288xf32, #tpu.memory_space<vmem>>, vector<8x15xf32>
    tpu.vector_store %arg3[%c0_178, %c96_179], %112 {strides = array<i32>} : memref<8x288xf32, #tpu.memory_space<vmem>>, vector<8x15xf32>,
    %c0_180 = arith.constant 0 : index
    %c111 = arith.constant 111 : index
    %114 = vector.load %arg3[%c0_180, %c111] : memref<8x288xf32, #tpu.memory_space<vmem>>, vector<8x1xf32>
    tpu.vector_store %arg3[%c0_180, %c111], %96 {strides = array<i32>} : memref<8x288xf32, #tpu.memory_space<vmem>>, vector<8x1xf32>,
    %c0_181 = arith.constant 0 : index
    %c97_182 = arith.constant 97 : index
    %115 = vector.load %arg1[%c0_181, %c97_182] : memref<8x256xf32, #tpu.memory_space<vmem>>, vector<8x15xf32>
    %c0_183 = arith.constant 0 : index
    %c112_184 = arith.constant 112 : index
    %116 = vector.load %arg3[%c0_183, %c112_184] : memref<8x288xf32, #tpu.memory_space<vmem>>, vector<8x15xf32>
    tpu.vector_store %arg3[%c0_183, %c112_184], %115 {strides = array<i32>} : memref<8x288xf32, #tpu.memory_space<vmem>>, vector<8x15xf32>,
    %c0_185 = arith.constant 0 : index
    %c127 = arith.constant 127 : index
    %117 = vector.load %arg3[%c0_185, %c127] : memref<8x288xf32, #tpu.memory_space<vmem>>, vector<8x1xf32>
    tpu.vector_store %arg3[%c0_185, %c127], %96 {strides = array<i32>} : memref<8x288xf32, #tpu.memory_space<vmem>>, vector<8x1xf32>,
    %c0_186 = arith.constant 0 : index
    %c113_187 = arith.constant 113 : index
    %118 = vector.load %arg1[%c0_186, %c113_187] : memref<8x256xf32, #tpu.memory_space<vmem>>, vector<8x15xf32>
    %c0_188 = arith.constant 0 : index
    %c128_189 = arith.constant 128 : index
    %119 = vector.load %arg3[%c0_188, %c128_189] : memref<8x288xf32, #tpu.memory_space<vmem>>, vector<8x15xf32>
    tpu.vector_store %arg3[%c0_188, %c128_189], %118 {strides = array<i32>} : memref<8x288xf32, #tpu.memory_space<vmem>>, vector<8x15xf32>,
    %c0_190 = arith.constant 0 : index
    %c143 = arith.constant 143 : index
    %120 = vector.load %arg3[%c0_190, %c143] : memref<8x288xf32, #tpu.memory_space<vmem>>, vector<8x1xf32>
    tpu.vector_store %arg3[%c0_190, %c143], %96 {strides = array<i32>} : memref<8x288xf32, #tpu.memory_space<vmem>>, vector<8x1xf32>,
    %c0_191 = arith.constant 0 : index
    %c129_192 = arith.constant 129 : index
    %121 = vector.load %arg1[%c0_191, %c129_192] : memref<8x256xf32, #tpu.memory_space<vmem>>, vector<8x15xf32>
    %c0_193 = arith.constant 0 : index
    %c144_194 = arith.constant 144 : index
    %122 = vector.load %arg3[%c0_193, %c144_194] : memref<8x288xf32, #tpu.memory_space<vmem>>, vector<8x15xf32>
    tpu.vector_store %arg3[%c0_193, %c144_194], %121 {strides = array<i32>} : memref<8x288xf32, #tpu.memory_space<vmem>>, vector<8x15xf32>,
    %c0_195 = arith.constant 0 : index
    %c159 = arith.constant 159 : index
    %123 = vector.load %arg3[%c0_195, %c159] : memref<8x288xf32, #tpu.memory_space<vmem>>, vector<8x1xf32>
    tpu.vector_store %arg3[%c0_195, %c159], %96 {strides = array<i32>} : memref<8x288xf32, #tpu.memory_space<vmem>>, vector<8x1xf32>,
    %c0_196 = arith.constant 0 : index
    %c145_197 = arith.constant 145 : index
    %124 = vector.load %arg1[%c0_196, %c145_197] : memref<8x256xf32, #tpu.memory_space<vmem>>, vector<8x15xf32>
    %c0_198 = arith.constant 0 : index
    %c160_199 = arith.constant 160 : index
    %125 = vector.load %arg3[%c0_198, %c160_199] : memref<8x288xf32, #tpu.memory_space<vmem>>, vector<8x15xf32>
    tpu.vector_store %arg3[%c0_198, %c160_199], %124 {strides = array<i32>} : memref<8x288xf32, #tpu.memory_space<vmem>>, vector<8x15xf32>,
    %c0_200 = arith.constant 0 : index
    %c175 = arith.constant 175 : index
    %126 = vector.load %arg3[%c0_200, %c175] : memref<8x288xf32, #tpu.memory_space<vmem>>, vector<8x1xf32>
    tpu.vector_store %arg3[%c0_200, %c175], %96 {strides = array<i32>} : memref<8x288xf32, #tpu.memory_space<vmem>>, vector<8x1xf32>,
    %c0_201 = arith.constant 0 : index
    %c161_202 = arith.constant 161 : index
    %127 = vector.load %arg1[%c0_201, %c161_202] : memref<8x256xf32, #tpu.memory_space<vmem>>, vector<8x15xf32>
    %c0_203 = arith.constant 0 : index
    %c176_204 = arith.constant 176 : index
    %128 = vector.load %arg3[%c0_203, %c176_204] : memref<8x288xf32, #tpu.memory_space<vmem>>, vector<8x15xf32>
    tpu.vector_store %arg3[%c0_203, %c176_204], %127 {strides = array<i32>} : memref<8x288xf32, #tpu.memory_space<vmem>>, vector<8x15xf32>,
    %c0_205 = arith.constant 0 : index
    %c191 = arith.constant 191 : index
    %129 = vector.load %arg3[%c0_205, %c191] : memref<8x288xf32, #tpu.memory_space<vmem>>, vector<8x1xf32>
    tpu.vector_store %arg3[%c0_205, %c191], %96 {strides = array<i32>} : memref<8x288xf32, #tpu.memory_space<vmem>>, vector<8x1xf32>,
    %c0_206 = arith.constant 0 : index
    %c177_207 = arith.constant 177 : index
    %130 = vector.load %arg1[%c0_206, %c177_207] : memref<8x256xf32, #tpu.memory_space<vmem>>, vector<8x15xf32>
    %c0_208 = arith.constant 0 : index
    %c192_209 = arith.constant 192 : index
    %131 = vector.load %arg3[%c0_208, %c192_209] : memref<8x288xf32, #tpu.memory_space<vmem>>, vector<8x15xf32>
    tpu.vector_store %arg3[%c0_208, %c192_209], %130 {strides = array<i32>} : memref<8x288xf32, #tpu.memory_space<vmem>>, vector<8x15xf32>,
    %c0_210 = arith.constant 0 : index
    %c207 = arith.constant 207 : index
    %132 = vector.load %arg3[%c0_210, %c207] : memref<8x288xf32, #tpu.memory_space<vmem>>, vector<8x1xf32>
    tpu.vector_store %arg3[%c0_210, %c207], %96 {strides = array<i32>} : memref<8x288xf32, #tpu.memory_space<vmem>>, vector<8x1xf32>,
    %c0_211 = arith.constant 0 : index
    %c193_212 = arith.constant 193 : index
    %133 = vector.load %arg1[%c0_211, %c193_212] : memref<8x256xf32, #tpu.memory_space<vmem>>, vector<8x15xf32>
    %c0_213 = arith.constant 0 : index
    %c208_214 = arith.constant 208 : index
    %134 = vector.load %arg3[%c0_213, %c208_214] : memref<8x288xf32, #tpu.memory_space<vmem>>, vector<8x15xf32>
    tpu.vector_store %arg3[%c0_213, %c208_214], %133 {strides = array<i32>} : memref<8x288xf32, #tpu.memory_space<vmem>>, vector<8x15xf32>,
    %c0_215 = arith.constant 0 : index
    %c223 = arith.constant 223 : index
    %135 = vector.load %arg3[%c0_215, %c223] : memref<8x288xf32, #tpu.memory_space<vmem>>, vector<8x1xf32>
    tpu.vector_store %arg3[%c0_215, %c223], %96 {strides = array<i32>} : memref<8x288xf32, #tpu.memory_space<vmem>>, vector<8x1xf32>,
    %c0_216 = arith.constant 0 : index
    %c209_217 = arith.constant 209 : index
    %136 = vector.load %arg1[%c0_216, %c209_217] : memref<8x256xf32, #tpu.memory_space<vmem>>, vector<8x15xf32>
    %c0_218 = arith.constant 0 : index
    %c224_219 = arith.constant 224 : index
    %137 = vector.load %arg3[%c0_218, %c224_219] : memref<8x288xf32, #tpu.memory_space<vmem>>, vector<8x15xf32>
    tpu.vector_store %arg3[%c0_218, %c224_219], %136 {strides = array<i32>} : memref<8x288xf32, #tpu.memory_space<vmem>>, vector<8x15xf32>,
    %c0_220 = arith.constant 0 : index
    %c239 = arith.constant 239 : index
    %138 = vector.load %arg3[%c0_220, %c239] : memref<8x288xf32, #tpu.memory_space<vmem>>, vector<8x1xf32>
    tpu.vector_store %arg3[%c0_220, %c239], %96 {strides = array<i32>} : memref<8x288xf32, #tpu.memory_space<vmem>>, vector<8x1xf32>,
    %c0_221 = arith.constant 0 : index
    %c225_222 = arith.constant 225 : index
    %139 = vector.load %arg1[%c0_221, %c225_222] : memref<8x256xf32, #tpu.memory_space<vmem>>, vector<8x15xf32>
    %c0_223 = arith.constant 0 : index
    %c240_224 = arith.constant 240 : index
    %140 = vector.load %arg3[%c0_223, %c240_224] : memref<8x288xf32, #tpu.memory_space<vmem>>, vector<8x15xf32>
    tpu.vector_store %arg3[%c0_223, %c240_224], %139 {strides = array<i32>} : memref<8x288xf32, #tpu.memory_space<vmem>>, vector<8x15xf32>,
    %c0_225 = arith.constant 0 : index
    %c255 = arith.constant 255 : index
    %141 = vector.load %arg3[%c0_225, %c255] : memref<8x288xf32, #tpu.memory_space<vmem>>, vector<8x1xf32>
    tpu.vector_store %arg3[%c0_225, %c255], %96 {strides = array<i32>} : memref<8x288xf32, #tpu.memory_space<vmem>>, vector<8x1xf32>,
    %c0_226 = arith.constant 0 : index
    %c241_227 = arith.constant 241 : index
    %142 = vector.load %arg1[%c0_226, %c241_227] : memref<8x256xf32, #tpu.memory_space<vmem>>, vector<8x15xf32>
    %c0_228 = arith.constant 0 : index
    %c256_229 = arith.constant 256 : index
    %143 = vector.load %arg3[%c0_228, %c256_229] : memref<8x288xf32, #tpu.memory_space<vmem>>, vector<8x15xf32>
    tpu.vector_store %arg3[%c0_228, %c256_229], %142 {strides = array<i32>} : memref<8x288xf32, #tpu.memory_space<vmem>>, vector<8x15xf32>,
    %c0_230 = arith.constant 0 : index
    %c271 = arith.constant 271 : index
    %144 = vector.load %arg3[%c0_230, %c271] : memref<8x288xf32, #tpu.memory_space<vmem>>, vector<8x1xf32>
    tpu.vector_store %arg3[%c0_230, %c271], %96 {strides = array<i32>} : memref<8x288xf32, #tpu.memory_space<vmem>>, vector<8x1xf32>,
    %c0_231 = arith.constant 0 : index
    %c0_232 = arith.constant 0 : index
    %145 = vector.load %arg3[%c0_231, %c0_232] : memref<8x288xf32, #tpu.memory_space<vmem>>, vector<8x256xf32>
    %c0_233 = arith.constant 0 : index
    %c512 = arith.constant 512 : index
    %146 = vector.load %arg2[%c0_233, %c512] : memref<8x2304xf32, #tpu.memory_space<vmem>>, vector<8x256xf32>
    tpu.vector_store %arg2[%c0_233, %c512], %145 {strides = array<i32>} : memref<8x2304xf32, #tpu.memory_space<vmem>>, vector<8x256xf32>,
    %c0_234 = arith.constant 0 : index
    %c16_235 = arith.constant 16 : index
    %147 = vector.load %arg3[%c0_234, %c16_235] : memref<8x288xf32, #tpu.memory_space<vmem>>, vector<8x256xf32>
    %c0_236 = arith.constant 0 : index
    %c1280 = arith.constant 1280 : index
    %148 = vector.load %arg2[%c0_236, %c1280] : memref<8x2304xf32, #tpu.memory_space<vmem>>, vector<8x256xf32>
    tpu.vector_store %arg2[%c0_236, %c1280], %147 {strides = array<i32>} : memref<8x2304xf32, #tpu.memory_space<vmem>>, vector<8x256xf32>,
    %c0_237 = arith.constant 0 : index
    %c32_238 = arith.constant 32 : index
    %149 = vector.load %arg3[%c0_237, %c32_238] : memref<8x288xf32, #tpu.memory_space<vmem>>, vector<8x256xf32>
    %c0_239 = arith.constant 0 : index
    %c2048 = arith.constant 2048 : index
    %150 = vector.load %arg2[%c0_239, %c2048] : memref<8x2304xf32, #tpu.memory_space<vmem>>, vector<8x256xf32>
    tpu.vector_store %arg2[%c0_239, %c2048], %149 {strides = array<i32>} : memref<8x2304xf32, #tpu.memory_space<vmem>>, vector<8x256xf32>,
    return
  }
  func.func @transform_0(%arg0: i32) -> (i32, i32) {
    %c0_i32 = arith.constant 0 : i32
    %c0_i32_0 = arith.constant 0 : i32
    return %arg0, %c0_i32 : i32, i32
  }
  func.func @transform_1(%arg0: i32) -> (i32, i32) {
    %c0_i32 = arith.constant 0 : i32
    %c0_i32_0 = arith.constant 0 : i32
    return %arg0, %c0_i32 : i32, i32
  }
}

</mosaic_0001>

<llo_original>
// kernel: tpu_custom_call.1
$region0: #{tpu_custom_call.1}
  #allocation0 [shape = 'u32[]', space=smem, size = 0x4, offset = 0x4, fixed_abs, tag = 'smem constant byte address 0x4 - core index']
  #allocation1 [shape = 'u32[144,128]{1,0:T(1,128)}', space=vmem, size = 0x12000, scoped, tag = 'internal scratch']
  #allocation2 [shape = 'f32[8,288]{1,0:T(8,128)}', space=vmem, size = 0x3000, scoped, tag = 'scratch operand']
  %s0 = inlined_call_operand.hbm [shape: f32[8,256], index: 0, kind: input, shape index: {}]
  %s1 = inlined_call_operand.hbm [shape: f32[8,2304], index: 1, kind: output, shape index: {}]
  %s2 = sld [smem:[#allocation0]]
  $region18: #{tpu_custom_call.1} parent=0
    _
  %s4 = ssub.s32 1, %s2
  %s5 = scalar_select 0, %s4, %s2
  $region1: #{tpu_custom_call.1} parent=0
    #allocation3 [shape = 'u8[8192]{0}', space=vmem, size = 0x2000, scoped, tag = 'input window, operand 0, single buffered']
    #allocation4 [shape = 's32[1]{0}', space=sflag, size = 0x4, scoped, tag = 'scoped memory for tpu_custom_call.1']
    #allocation5 [shape = 's32[1]{0}', space=sflag, size = 0x4, scoped, tag = 'scoped memory for tpu_custom_call.1']
    #allocation6 [shape = 'u8[73728]{0}', space=vmem, size = 0x12000, scoped, tag = 'output window, operand 0, single buffered']
    %6 = vsyncpa [#allocation4], 0
    %7 = vsyncpa [#allocation5], 0
    // Predicated region
    $region2: #{tpu_custom_call.1} parent=1 // pred_check
      _
    $region3: #{tpu_custom_call.1} parent=1 // pred_check_branch
      %9 = sbr.rel (0) target = $region5
    $region4: #{tpu_custom_call.1} parent=1 // pred_region
      %s11 = ssub.s32 256, 256
      %12 = vsyncadd [#allocation4], %s11
      %s14 = sshll.u32 [#allocation3], 4
      %s15 = int_to_ptr.vmem [resolvable:$true] %s14
      %17 = dma.hbm_to_vmem [thread:$0]  %s0, 256, %s15, [#allocation4]
    $region5: #{tpu_custom_call.1} parent=1 // pred_fallthru
      _
    // Predicated region
    $region6: #{tpu_custom_call.1} parent=1 // pred_check
      _
    $region7: #{tpu_custom_call.1} parent=1 // pred_check_branch
      %19 = sbr.rel (0) target = $region9
    $region8: #{tpu_custom_call.1} parent=1 // pred_region
      %20 = dma.done [#allocation4], 256
    $region9: #{tpu_custom_call.1} parent=1 // pred_fallthru
      _
    %vm21 = vcmask 130048
    %22 = vst.msk [vmem:[#allocation2] sm:$0xff] %vm21, 0.0
    %vm23 = vcmask 261248
    %24 = vst.msk [vmem:[#allocation2 + $0x10] sm:$0xff] %vm23, 0.0
    %vm25 = vcmask 138368
    %26 = vst.msk [vmem:[#allocation2] sm:$0xff] %vm25, 0.0
    %v27 = vld [vmem:[#allocation3] sm:$0xff]
    %29 = vrot.lane.b32.xlu0 %v27, 17
    %v30 = vpop.permute.xlu0 %29
    %vm32 = vcmask 261256
    %33 = vst.msk [vmem:[#allocation2] sm:$0xff] %vm32, %v30
    %vm34 = vcmask 269568
    %35 = vst.msk [vmem:[#allocation2] sm:$0xff] %vm34, 0.0
    %v36 = vld [vmem:[#allocation3] sm:$0xff]
    %38 = vrot.lane.b32.xlu0 %v36, 17
    %v39 = vpop.permute.xlu0 %38
    %vm41 = vcmask 392456
    %42 = vst.msk [vmem:[#allocation2] sm:$0xff] %vm41, %v39
    %vm43 = vcmask 400768
    %44 = vst.msk [vmem:[#allocation2] sm:$0xff] %vm43, 0.0
    %v45 = vld [vmem:[#allocation3] sm:$0xff]
    %47 = vrot.lane.b32.xlu0 %v45, 17
    %v48 = vpop.permute.xlu0 %47
    %vm50 = vcmask 523656
    %51 = vst.msk [vmem:[#allocation2] sm:$0xff] %vm50, %v48
    %vm52 = vcmask 531968
    %53 = vst.msk [vmem:[#allocation2] sm:$0xff] %vm52, 0.0
    %v54 = vld [vmem:[#allocation3] sm:$0xff]
    %56 = vrot.lane.b32.xlu0 %v54, 17
    %v57 = vpop.permute.xlu0 %56
    %vm59 = vcmask 654856
    %60 = vst.msk [vmem:[#allocation2] sm:$0xff] %vm59, %v57
    %vm61 = vcmask 663168
    %62 = vst.msk [vmem:[#allocation2] sm:$0xff] %vm61, 0.0
    %v63 = vld [vmem:[#allocation3] sm:$0xff]
    %65 = vrot.lane.b32.xlu0 %v63, 17
    %v66 = vpop.permute.xlu0 %65
    %vm68 = vcmask 786056
    %69 = vst.msk [vmem:[#allocation2] sm:$0xff] %vm68, %v66
    %vm70 = vcmask 794368
    %71 = vst.msk [vmem:[#allocation2] sm:$0xff] %vm70, 0.0
    %v72 = vld [vmem:[#allocation3] sm:$0xff]
    %74 = vrot.lane.b32.xlu0 %v72, 17
    %v75 = vpop.permute.xlu0 %74
    %vm77 = vcmask 917256
    %78 = vst.msk [vmem:[#allocation2] sm:$0xff] %vm77, %v75
    %vm79 = vcmask 925568
    %80 = vst.msk [vmem:[#allocation2] sm:$0xff] %vm79, 0.0
    %v81 = vld [vmem:[#allocation3] sm:$0xff]
    %83 = vrot.lane.b32.xlu0 %v81, 17
    %v84 = vpop.permute.xlu0 %83
    %vm86 = vcmask 1048456
    %87 = vst.msk [vmem:[#allocation2] sm:$0xff] %vm86, %v84
    %vm88 = vcmask 7168
    %89 = vst.msk [vmem:[#allocation2 + $0x8] sm:$0xff] %vm88, 0.0
    %v90 = vld [vmem:[#allocation3] sm:$0xff]
    %92 = vrot.lane.b32.xlu0 %v90, 17
    %v93 = vpop.permute.xlu0 %92
    %vm95 = vcmask 130056
    %96 = vst.msk [vmem:[#allocation2 + $0x8] sm:$0xff] %vm95, %v93
    %97 = vst.msk [vmem:[#allocation2 + $0x8] sm:$0xff] %vm25, 0.0
    %v98 = vld [vmem:[#allocation3 + $0x8] sm:$0xff]
    %100 = vrot.lane.b32.xlu0 %v98, 17
    %v101 = vpop.permute.xlu0 %100
    %103 = vst.msk [vmem:[#allocation2 + $0x8] sm:$0xff] %vm32, %v101
    %104 = vst.msk [vmem:[#allocation2 + $0x8] sm:$0xff] %vm34, 0.0
    %v105 = vld [vmem:[#allocation3 + $0x8] sm:$0xff]
    %107 = vrot.lane.b32.xlu0 %v105, 17
    %v108 = vpop.permute.xlu0 %107
    %110 = vst.msk [vmem:[#allocation2 + $0x8] sm:$0xff] %vm41, %v108
    %111 = vst.msk [vmem:[#allocation2 + $0x8] sm:$0xff] %vm43, 0.0
    %v112 = vld [vmem:[#allocation3 + $0x8] sm:$0xff]
    %114 = vrot.lane.b32.xlu0 %v112, 17
    %v115 = vpop.permute.xlu0 %114
    %117 = vst.msk [vmem:[#allocation2 + $0x8] sm:$0xff] %vm50, %v115
    %118 = vst.msk [vmem:[#allocation2 + $0x8] sm:$0xff] %vm52, 0.0
    %v119 = vld [vmem:[#allocation3 + $0x8] sm:$0xff]
    %121 = vrot.lane.b32.xlu0 %v119, 17
    %v122 = vpop.permute.xlu0 %121
    %124 = vst.msk [vmem:[#allocation2 + $0x8] sm:$0xff] %vm59, %v122
    %125 = vst.msk [vmem:[#allocation2 + $0x8] sm:$0xff] %vm61, 0.0
    %v126 = vld [vmem:[#allocation3 + $0x8] sm:$0xff]
    %128 = vrot.lane.b32.xlu0 %v126, 17
    %v129 = vpop.permute.xlu0 %128
    %131 = vst.msk [vmem:[#allocation2 + $0x8] sm:$0xff] %vm68, %v129
    %132 = vst.msk [vmem:[#allocation2 + $0x8] sm:$0xff] %vm70, 0.0
    %v133 = vld [vmem:[#allocation3 + $0x8] sm:$0xff]
    %135 = vrot.lane.b32.xlu0 %v133, 17
    %v136 = vpop.permute.xlu0 %135
    %138 = vst.msk [vmem:[#allocation2 + $0x8] sm:$0xff] %vm77, %v136
    %139 = vst.msk [vmem:[#allocation2 + $0x8] sm:$0xff] %vm79, 0.0
    %v140 = vld [vmem:[#allocation3 + $0x8] sm:$0xff]
    %142 = vrot.lane.b32.xlu0 %v140, 17
    %v143 = vpop.permute.xlu0 %142
    %145 = vst.msk [vmem:[#allocation2 + $0x8] sm:$0xff] %vm86, %v143
    %146 = vst.msk [vmem:[#allocation2 + $0x10] sm:$0xff] %vm88, 0.0
    %v147 = vld [vmem:[#allocation3 + $0x8] sm:$0xff]
    %149 = vrot.lane.b32.xlu0 %v147, 17
    %v150 = vpop.permute.xlu0 %149
    %152 = vst.msk [vmem:[#allocation2 + $0x10] sm:$0xff] %vm95, %v150
    %v153 = vld [vmem:[#allocation2] sm:$0xff]
    %v154 = vld [vmem:[#allocation2 + $0x8] sm:$0xff]
    %155 = vst [vmem:[#allocation6] sm:$0xff] %v153
    %156 = vst [vmem:[#allocation6 + $0x8] sm:$0xff] %v154
    %v157 = vld [vmem:[#allocation2] sm:$0xff]
    %v158 = vld [vmem:[#allocation2 + $0x8] sm:$0xff]
    %v159 = vld [vmem:[#allocation2 + $0x10] sm:$0xff]
    %163 = vrot.lane.b32.xlu0 %v157, 112
    %v164 = vpop.permute.xlu0 %163
    %165 = vrot.lane.b32.xlu0 %v158, 112
    %v166 = vpop.permute.xlu0 %165
    %167 = vrot.lane.b32.xlu0 %v159, 112
    %v168 = vpop.permute.xlu0 %167
    %vm169 = vcmask 916480
    %v170 = vsel %vm169, %v164, %v166
    %v171 = vsel %vm169, %v166, %v168
    %174 = vst [vmem:[#allocation6 + $0x30] sm:$0xff] %v170
    %175 = vst [vmem:[#allocation6 + $0x38] sm:$0xff] %v171
    %v176 = vld [vmem:[#allocation2] sm:$0xff]
    %v177 = vld [vmem:[#allocation2 + $0x8] sm:$0xff]
    %v178 = vld [vmem:[#allocation2 + $0x10] sm:$0xff]
    %182 = vrot.lane.b32.xlu0 %v176, 96
    %v183 = vpop.permute.xlu0 %182
    %184 = vrot.lane.b32.xlu0 %v177, 96
    %v185 = vpop.permute.xlu0 %184
    %186 = vrot.lane.b32.xlu0 %v178, 96
    %v187 = vpop.permute.xlu0 %186
    %vm188 = vcmask 785408
    %v189 = vsel %vm188, %v183, %v185
    %v190 = vsel %vm188, %v185, %v187
    %193 = vst [vmem:[#allocation6 + $0x60] sm:$0xff] %v189
    %194 = vst [vmem:[#allocation6 + $0x68] sm:$0xff] %v190
    %v195 = vld [vmem:[#allocation3] sm:$0xff]
    %197 = vrot.lane.b32.xlu0 %v195, 16
    %v198 = vpop.permute.xlu0 %197
    %200 = vst.msk [vmem:[#allocation2] sm:$0xff] %vm23, %v198
    %v201 = vld [vmem:[#allocation3] sm:$0xff]
    %203 = vrot.lane.b32.xlu0 %v201, 16
    %v204 = vpop.permute.xlu0 %203
    %vm206 = vcmask 392448
    %207 = vst.msk [vmem:[#allocation2] sm:$0xff] %vm206, %v204
    %v208 = vld [vmem:[#allocation3] sm:$0xff]
    %210 = vrot.lane.b32.xlu0 %v208, 16
    %v211 = vpop.permute.xlu0 %210
    %vm213 = vcmask 523648
    %214 = vst.msk [vmem:[#allocation2] sm:$0xff] %vm213, %v211
    %v215 = vld [vmem:[#allocation3] sm:$0xff]
    %217 = vrot.lane.b32.xlu0 %v215, 16
    %v218 = vpop.permute.xlu0 %217
    %vm220 = vcmask 654848
    %221 = vst.msk [vmem:[#allocation2] sm:$0xff] %vm220, %v218
    %v222 = vld [vmem:[#allocation3] sm:$0xff]
    %224 = vrot.lane.b32.xlu0 %v222, 16
    %v225 = vpop.permute.xlu0 %224
    %vm227 = vcmask 786048
    %228 = vst.msk [vmem:[#allocation2] sm:$0xff] %vm227, %v225
    %v229 = vld [vmem:[#allocation3] sm:$0xff]
    %231 = vrot.lane.b32.xlu0 %v229, 16
    %v232 = vpop.permute.xlu0 %231
    %vm234 = vcmask 917248
    %235 = vst.msk [vmem:[#allocation2] sm:$0xff] %vm234, %v232
    %v236 = vld [vmem:[#allocation3] sm:$0xff]
    %238 = vrot.lane.b32.xlu0 %v236, 16
    %v239 = vpop.permute.xlu0 %238
    %vm241 = vcmask 1048448
    %242 = vst.msk [vmem:[#allocation2] sm:$0xff] %vm241, %v239
    %v243 = vld [vmem:[#allocation3] sm:$0xff]
    %245 = vrot.lane.b32.xlu0 %v243, 16
    %v246 = vpop.permute.xlu0 %245
    %248 = vst.msk [vmem:[#allocation2 + $0x8] sm:$0xff] %vm21, %v246
    %v249 = vld [vmem:[#allocation3 + $0x8] sm:$0xff]
    %251 = vrot.lane.b32.xlu0 %v249, 16
    %v252 = vpop.permute.xlu0 %251
    %254 = vst.msk [vmem:[#allocation2 + $0x8] sm:$0xff] %vm23, %v252
    %v255 = vld [vmem:[#allocation3 + $0x8] sm:$0xff]
    %257 = vrot.lane.b32.xlu0 %v255, 16
    %v258 = vpop.permute.xlu0 %257
    %260 = vst.msk [vmem:[#allocation2 + $0x8] sm:$0xff] %vm206, %v258
    %v261 = vld [vmem:[#allocation3 + $0x8] sm:$0xff]
    %263 = vrot.lane.b32.xlu0 %v261, 16
    %v264 = vpop.permute.xlu0 %263
    %266 = vst.msk [vmem:[#allocation2 + $0x8] sm:$0xff] %vm213, %v264
    %v267 = vld [vmem:[#allocation3 + $0x8] sm:$0xff]
    %269 = vrot.lane.b32.xlu0 %v267, 16
    %v270 = vpop.permute.xlu0 %269
    %272 = vst.msk [vmem:[#allocation2 + $0x8] sm:$0xff] %vm220, %v270
    %v273 = vld [vmem:[#allocation3 + $0x8] sm:$0xff]
    %275 = vrot.lane.b32.xlu0 %v273, 16
    %v276 = vpop.permute.xlu0 %275
    %278 = vst.msk [vmem:[#allocation2 + $0x8] sm:$0xff] %vm227, %v276
    %v279 = vld [vmem:[#allocation3 + $0x8] sm:$0xff]
    %281 = vrot.lane.b32.xlu0 %v279, 16
    %v282 = vpop.permute.xlu0 %281
    %284 = vst.msk [vmem:[#allocation2 + $0x8] sm:$0xff] %vm234, %v282
    %v285 = vld [vmem:[#allocation3 + $0x8] sm:$0xff]
    %287 = vrot.lane.b32.xlu0 %v285, 16
    %v288 = vpop.permute.xlu0 %287
    %290 = vst.msk [vmem:[#allocation2 + $0x8] sm:$0xff] %vm241, %v288
    %v291 = vld [vmem:[#allocation3 + $0x8] sm:$0xff]
    %293 = vrot.lane.b32.xlu0 %v291, 16
    %v294 = vpop.permute.xlu0 %293
    %296 = vst.msk [vmem:[#allocation2 + $0x10] sm:$0xff] %vm21, %v294
    %v297 = vld [vmem:[#allocation2] sm:$0xff]
    %v298 = vld [vmem:[#allocation2 + $0x8] sm:$0xff]
    %299 = vst [vmem:[#allocation6 + $0x10] sm:$0xff] %v297
    %300 = vst [vmem:[#allocation6 + $0x18] sm:$0xff] %v298
    %v301 = vld [vmem:[#allocation2] sm:$0xff]
    %v302 = vld [vmem:[#allocation2 + $0x8] sm:$0xff]
    %v303 = vld [vmem:[#allocation2 + $0x10] sm:$0xff]
    %307 = vrot.lane.b32.xlu0 %v301, 112
    %v308 = vpop.permute.xlu0 %307
    %309 = vrot.lane.b32.xlu0 %v302, 112
    %v310 = vpop.permute.xlu0 %309
    %311 = vrot.lane.b32.xlu0 %v303, 112
    %v312 = vpop.permute.xlu0 %311
    %v313 = vsel %vm169, %v308, %v310
    %v314 = vsel %vm169, %v310, %v312
    %317 = vst [vmem:[#allocation6 + $0x40] sm:$0xff] %v313
    %318 = vst [vmem:[#allocation6 + $0x48] sm:$0xff] %v314
    %v319 = vld [vmem:[#allocation2] sm:$0xff]
    %v320 = vld [vmem:[#allocation2 + $0x8] sm:$0xff]
    %v321 = vld [vmem:[#allocation2 + $0x10] sm:$0xff]
    %325 = vrot.lane.b32.xlu0 %v319, 96
    %v326 = vpop.permute.xlu0 %325
    %327 = vrot.lane.b32.xlu0 %v320, 96
    %v328 = vpop.permute.xlu0 %327
    %329 = vrot.lane.b32.xlu0 %v321, 96
    %v330 = vpop.permute.xlu0 %329
    %v331 = vsel %vm188, %v326, %v328
    %v332 = vsel %vm188, %v328, %v330
    %335 = vst [vmem:[#allocation6 + $0x70] sm:$0xff] %v331
    %336 = vst [vmem:[#allocation6 + $0x78] sm:$0xff] %v332
    %v337 = vld [vmem:[#allocation3] sm:$0xff]
    %339 = vrot.lane.b32.xlu0 %v337, 15
    %v340 = vpop.permute.xlu0 %339
    %vm342 = vcmask 253056
    %343 = vst.msk [vmem:[#allocation2] sm:$0xff] %vm342, %v340
    %vm344 = vcmask 261368
    %345 = vst.msk [vmem:[#allocation2] sm:$0xff] %vm344, 0.0
    %v346 = vld [vmem:[#allocation3] sm:$0xff]
    %348 = vrot.lane.b32.xlu0 %v346, 15
    %v349 = vpop.permute.xlu0 %348
    %vm351 = vcmask 384256
    %352 = vst.msk [vmem:[#allocation2] sm:$0xff] %vm351, %v349
    %vm353 = vcmask 392568
    %354 = vst.msk [vmem:[#allocation2] sm:$0xff] %vm353, 0.0
    %v355 = vld [vmem:[#allocation3] sm:$0xff]
    %357 = vrot.lane.b32.xlu0 %v355, 15
    %v358 = vpop.permute.xlu0 %357
    %vm360 = vcmask 515456
    %361 = vst.msk [vmem:[#allocation2] sm:$0xff] %vm360, %v358
    %vm362 = vcmask 523768
    %363 = vst.msk [vmem:[#allocation2] sm:$0xff] %vm362, 0.0
    %v364 = vld [vmem:[#allocation3] sm:$0xff]
    %366 = vrot.lane.b32.xlu0 %v364, 15
    %v367 = vpop.permute.xlu0 %366
    %vm369 = vcmask 646656
    %370 = vst.msk [vmem:[#allocation2] sm:$0xff] %vm369, %v367
    %vm371 = vcmask 654968
    %372 = vst.msk [vmem:[#allocation2] sm:$0xff] %vm371, 0.0
    %v373 = vld [vmem:[#allocation3] sm:$0xff]
    %375 = vrot.lane.b32.xlu0 %v373, 15
    %v376 = vpop.permute.xlu0 %375
    %vm378 = vcmask 777856
    %379 = vst.msk [vmem:[#allocation2] sm:$0xff] %vm378, %v376
    %vm380 = vcmask 786168
    %381 = vst.msk [vmem:[#allocation2] sm:$0xff] %vm380, 0.0
    %v382 = vld [vmem:[#allocation3] sm:$0xff]
    %384 = vrot.lane.b32.xlu0 %v382, 15
    %v385 = vpop.permute.xlu0 %384
    %vm387 = vcmask 909056
    %388 = vst.msk [vmem:[#allocation2] sm:$0xff] %vm387, %v385
    %vm389 = vcmask 917368
    %390 = vst.msk [vmem:[#allocation2] sm:$0xff] %vm389, 0.0
    %v391 = vld [vmem:[#allocation3] sm:$0xff]
    %393 = vrot.lane.b32.xlu0 %v391, 15
    %v394 = vpop.permute.xlu0 %393
    %vm396 = vcmask 1040256
    %397 = vst.msk [vmem:[#allocation2] sm:$0xff] %vm396, %v394
    %vm398 = vcmask 1048568
    %399 = vst.msk [vmem:[#allocation2] sm:$0xff] %vm398, 0.0
    %v400 = vld [vmem:[#allocation3] sm:$0xff]
    %402 = vrot.lane.b32.xlu0 %v400, 15
    %v403 = vpop.permute.xlu0 %402
    %vm405 = vcmask 121856
    %406 = vst.msk [vmem:[#allocation2 + $0x8] sm:$0xff] %vm405, %v403
    %vm407 = vcmask 130168
    %408 = vst.msk [vmem:[#allocation2 + $0x8] sm:$0xff] %vm407, 0.0
    %v409 = vld [vmem:[#allocation3 + $0x8] sm:$0xff]
    %411 = vrot.lane.b32.xlu0 %v409, 15
    %v412 = vpop.permute.xlu0 %411
    %414 = vst.msk [vmem:[#allocation2 + $0x8] sm:$0xff] %vm342, %v412
    %415 = vst.msk [vmem:[#allocation2 + $0x8] sm:$0xff] %vm344, 0.0
    %v416 = vld [vmem:[#allocation3 + $0x8] sm:$0xff]
    %418 = vrot.lane.b32.xlu0 %v416, 15
    %v419 = vpop.permute.xlu0 %418
    %421 = vst.msk [vmem:[#allocation2 + $0x8] sm:$0xff] %vm351, %v419
    %422 = vst.msk [vmem:[#allocation2 + $0x8] sm:$0xff] %vm353, 0.0
    %v423 = vld [vmem:[#allocation3 + $0x8] sm:$0xff]
    %425 = vrot.lane.b32.xlu0 %v423, 15
    %v426 = vpop.permute.xlu0 %425
    %428 = vst.msk [vmem:[#allocation2 + $0x8] sm:$0xff] %vm360, %v426
    %429 = vst.msk [vmem:[#allocation2 + $0x8] sm:$0xff] %vm362, 0.0
    %v430 = vld [vmem:[#allocation3 + $0x8] sm:$0xff]
    %432 = vrot.lane.b32.xlu0 %v430, 15
    %v433 = vpop.permute.xlu0 %432
    %435 = vst.msk [vmem:[#allocation2 + $0x8] sm:$0xff] %vm369, %v433
    %436 = vst.msk [vmem:[#allocation2 + $0x8] sm:$0xff] %vm371, 0.0
    %v437 = vld [vmem:[#allocation3 + $0x8] sm:$0xff]
    %439 = vrot.lane.b32.xlu0 %v437, 15
    %v440 = vpop.permute.xlu0 %439
    %442 = vst.msk [vmem:[#allocation2 + $0x8] sm:$0xff] %vm378, %v440
    %443 = vst.msk [vmem:[#allocation2 + $0x8] sm:$0xff] %vm380, 0.0
    %v444 = vld [vmem:[#allocation3 + $0x8] sm:$0xff]
    %446 = vrot.lane.b32.xlu0 %v444, 15
    %v447 = vpop.permute.xlu0 %446
    %449 = vst.msk [vmem:[#allocation2 + $0x8] sm:$0xff] %vm387, %v447
    %450 = vst.msk [vmem:[#allocation2 + $0x8] sm:$0xff] %vm389, 0.0
    %v451 = vld [vmem:[#allocation3 + $0x8] sm:$0xff]
    %453 = vrot.lane.b32.xlu0 %v451, 15
    %v454 = vpop.permute.xlu0 %453
    %456 = vst.msk [vmem:[#allocation2 + $0x8] sm:$0xff] %vm396, %v454
    %457 = vst.msk [vmem:[#allocation2 + $0x8] sm:$0xff] %vm398, 0.0
    %v458 = vld [vmem:[#allocation3 + $0x8] sm:$0xff]
    %460 = vrot.lane.b32.xlu0 %v458, 15
    %v461 = vpop.permute.xlu0 %460
    %463 = vst.msk [vmem:[#allocation2 + $0x10] sm:$0xff] %vm405, %v461
    %464 = vst.msk [vmem:[#allocation2 + $0x10] sm:$0xff] %vm407, 0.0
    %v465 = vld [vmem:[#allocation2] sm:$0xff]
    %v466 = vld [vmem:[#allocation2 + $0x8] sm:$0xff]
    %467 = vst [vmem:[#allocation6 + $0x20] sm:$0xff] %v465
    %468 = vst [vmem:[#allocation6 + $0x28] sm:$0xff] %v466
    %v469 = vld [vmem:[#allocation2] sm:$0xff]
    %v470 = vld [vmem:[#allocation2 + $0x8] sm:$0xff]
    %v471 = vld [vmem:[#allocation2 + $0x10] sm:$0xff]
    %475 = vrot.lane.b32.xlu0 %v469, 112
    %v476 = vpop.permute.xlu0 %475
    %477 = vrot.lane.b32.xlu0 %v470, 112
    %v478 = vpop.permute.xlu0 %477
    %479 = vrot.lane.b32.xlu0 %v471, 112
    %v480 = vpop.permute.xlu0 %479
    %v481 = vsel %vm169, %v476, %v478
    %v482 = vsel %vm169, %v478, %v480
    %485 = vst [vmem:[#allocation6 + $0x50] sm:$0xff] %v481
    %486 = vst [vmem:[#allocation6 + $0x58] sm:$0xff] %v482
    %v487 = vld [vmem:[#allocation2] sm:$0xff]
    %v488 = vld [vmem:[#allocation2 + $0x8] sm:$0xff]
    %v489 = vld [vmem:[#allocation2 + $0x10] sm:$0xff]
    %493 = vrot.lane.b32.xlu0 %v487, 96
    %v494 = vpop.permute.xlu0 %493
    %495 = vrot.lane.b32.xlu0 %v488, 96
    %v496 = vpop.permute.xlu0 %495
    %497 = vrot.lane.b32.xlu0 %v489, 96
    %v498 = vpop.permute.xlu0 %497
    %v499 = vsel %vm188, %v494, %v496
    %v500 = vsel %vm188, %v496, %v498
    %503 = vst [vmem:[#allocation6 + $0x80] sm:$0xff] %v499
    %504 = vst [vmem:[#allocation6 + $0x88] sm:$0xff] %v500
    // Predicated region
    $region10: #{tpu_custom_call.1} parent=1 // pred_check
      _
    $region11: #{tpu_custom_call.1} parent=1 // pred_check_branch
      %506 = sbr.rel (0) target = $region13
    $region12: #{tpu_custom_call.1} parent=1 // pred_region
      %s508 = ssub.s32 2304, 2304
      %509 = vsyncadd [#allocation5], %s508
      %s511 = sshll.u32 [#allocation6], 4
      %s512 = int_to_ptr.vmem [resolvable:$true] %s511
      %514 = dma.vmem_to_hbm [thread:$0]  %s512, 2304, %s1, [#allocation5]
    $region13: #{tpu_custom_call.1} parent=1 // pred_fallthru
      _
    // Predicated region
    $region14: #{tpu_custom_call.1} parent=1 // pred_check
      _
    $region15: #{tpu_custom_call.1} parent=1 // pred_check_branch
      %516 = sbr.rel (0) target = $region17
    $region16: #{tpu_custom_call.1} parent=1 // pred_region
      %517 = dma.done [#allocation5], 2304
    $region17: #{tpu_custom_call.1} parent=1 // pred_fallthru
      _
    %518 = vsyncpa [#allocation4], 1
    %519 = vsyncpa [#allocation5], 1

</llo_original>
